<compile_context>
chip_gen: v7x
topology: tpu7x:2x2x1
jax: 0.10.0
libtpu: 0.0.40
codegen_flags: <defaults>
</compile_context>

<pallas_src>
import functools

import jax
import jax.numpy as jnp
from jax import lax
from jax.experimental import pallas as pl
from jax.experimental.pallas import tpu as pltpu

_NEG = -1e30       # mask bias for non-edges (leaky_relu -> -2e29, exp -> 0)
_LEAKY = 0.2
_GN_EPS = 1e-5


def _round_up(x, m):
    return ((x + m - 1) // m) * m


def _vmem_capacity_bytes():
    """Generation-aware VMEM capacity (64 MiB v7x, 128 MiB v5e/v6e)."""
    try:
        info = pltpu.get_tpu_info()
        for attr in ("vmem_capacity_bytes", "vmem_bytes", "vmem_size_bytes"):
            v = getattr(info, attr, None)
            if v:
                return int(v)
    except Exception:
        pass
    return 64 * 1024 * 1024            # conservative fallback (v7x-sized)


def _softmax_compute_dtype():
    """bf16 elementwise softmax math only on chips with bf16 VPU/EUP."""
    try:
        kind = jax.devices()[0].device_kind.lower()
    except Exception:
        return jnp.float32
    if ("v6" in kind) or ("v7" in kind) or ("7x" in kind):
        return jnp.bfloat16
    return jnp.float32                 # v5e and older: no bf16 VALU/EUP


def _pick_dst_tile(n, ns_pad, heads, out_ch, packed_w, vmem_cap):
    """Largest dst-row tile whose double-buffered blocks + in-kernel temps fit."""
    budget = int(vmem_cap * 0.55)      # headroom below vmem_limit_bytes
    # resident (constant index_map) blocks: a_src (f32) and h (bf16), x2 buffers
    fixed = 2 * heads * ns_pad * 4 + 2 * ns_pad * heads * out_ch * 2
    t = 1024
    while t > 16:
        e_blk = 2 * heads * t * ns_pad * 2      # double-buffered bf16 e stream
        temps = 3 * t * ns_pad * 4              # worst-case f32 logit/p temporaries
        io = 2 * t * packed_w * 4 + 2 * t * heads * 4 + 2 * t * out_ch * 4
        if fixed + e_blk + temps + io <= budget:
            break
        t //= 2
    t = max(16, min(t, _round_up(n, 16)))
    t = (t // 16) * 16
    # v7x megacore: keep at least 2 dst tiles so "parallel" can split.
    if t >= 32 and -(-n // t) < 2:
        t = max(16, ((t // 2) // 16) * 16)
    return t


# ---------------------------------------------------------------------------
# Kernel 1: per dst-row tile -- masked softmax over sources (per head) with
# deferred normalization, alpha @ h aggregation, head mean + bias (+ skip),
# packed lane-dense output [out | m | s | pad].
# ---------------------------------------------------------------------------
def _gat_tile_kernel(e_ref, adst_ref, asrc_ref, h_ref, bias_ref, *rest,
                     heads, out_ch, skip_connection, compute_dtype):
    if skip_connection:
        x_ref, packed_ref = rest
    else:
        (packed_ref,) = rest
    f32 = jnp.float32
    cdt = compute_dtype
    T = adst_ref.shape[0]

    acc = jnp.zeros((T, out_ch), f32)
    m_cols = []
    s_cols = []
    for hh in range(heads):                                   # static, H small
        # non-edges carry a -1e30 bias already folded into e_ref
        logit = (adst_ref[:, hh:hh + 1].astype(cdt)
                 + asrc_ref[hh:hh + 1, :].astype(cdt)
                 + e_ref[hh].astype(cdt))                     # [T, Ns]
        logit = jnp.where(logit > 0, logit, _LEAKY * logit)   # leaky_relu(0.2)
        m = jnp.max(logit, axis=1, keepdims=True)             # [T, 1]
        p = jnp.exp(logit - m)                                # un-normalized
        s = jnp.sum(p.astype(f32), axis=1, keepdims=True)     # [T, 1] f32
        pb = p if p.dtype == jnp.bfloat16 else p.astype(jnp.bfloat16)
        # normalization deferred past the matmul: scale the [T, C] result,
        # not the [T, Ns] probabilities (removes a [T, Ns] VPU pass per head).
        acc = acc + (jnp.dot(pb, h_ref[:, hh * out_ch:(hh + 1) * out_ch],
                             preferred_element_type=f32)
                     * pl.reciprocal(s, approx=True))
        m_cols.append(m.astype(f32))
        s_cols.append(s)

    out = acc * (1.0 / heads) + bias_ref[...]                 # concat=False
    if skip_connection:
        out = out + x_ref[...]
    # single lane-dense (multiple-of-128 wide) packed output
    cols = [out] + m_cols + s_cols
    pad = packed_ref.shape[1] - (out_ch + 2 * heads)
    if pad:
        cols.append(jnp.zeros((T, pad), f32))
    packed_ref[...] = jnp.concatenate(cols, axis=1)


# ---------------------------------------------------------------------------
# Kernel 2: GraphNorm apply + ReLU (elementwise, lane-dense folded layout).
# ---------------------------------------------------------------------------
def _graphnorm_relu_kernel(c_ref, v_ref, w_ref, b_ref, y_ref):
    y = w_ref[...] * c_ref[...] * lax.rsqrt(v_ref[...] + _GN_EPS) + b_ref[...]
    y_ref[...] = jnp.maximum(y, 0.0)


# ---------------------------------------------------------------------------
# Parameters (matches PyG GATConv + GraphNorm layout)
# ---------------------------------------------------------------------------
def init_params(key, hidden_dim, edge_dim, heads):
    C = hidden_dim
    k = jax.random.split(key, 5)
    s = 0.1
    return {
        "heads": heads,
        "w": s * jax.random.normal(k[0], (hidden_dim, heads * C), jnp.float32),
        "w_edge": s * jax.random.normal(k[1], (edge_dim, heads * C), jnp.float32),
        "att_src": s * jax.random.normal(k[2], (heads, C), jnp.float32),
        "att_dst": s * jax.random.normal(k[3], (heads, C), jnp.float32),
        "att_edge": s * jax.random.normal(k[4], (heads, C), jnp.float32),
        "bias": jnp.zeros((C,), jnp.float32),            # PyG zeros-init
        "gn_weight": jnp.ones((C,), jnp.float32),        # GraphNorm defaults
        "gn_bias": jnp.zeros((C,), jnp.float32),
        "gn_mean_scale": jnp.ones((C,), jnp.float32),
    }


# ---------------------------------------------------------------------------
# Forward
# ---------------------------------------------------------------------------
def gatconv_layer_forward(node, edge_index, edge_attr, batch, params, *,
                          num_graphs, skip_connection=False):
    # TODO(synk): the PyTorch module passes `batch_ptr` to GraphNorm; here it is
    # interpreted as the per-node graph assignment vector (PyG GraphNorm `batch`).
    # TODO(synk): the dense [H, N_dst, N_src] formulation assumes at most one
    # edge per (dst, src) pair (duplicate parallel edges would be summed by PyG).
    N, F = node.shape
    heads = params["heads"]
    C = params["w"].shape[1] // heads
    Fe = edge_attr.shape[1]
    B = int(num_graphs)
    if skip_connection:
        assert F == C, "skip_connection requires in_features == out_channels"

    node = node.astype(jnp.float32)
    edge_attr = edge_attr.astype(jnp.float32)
    src, dst = edge_index[0], edge_index[1]
    E = src.shape[0]

    vmem_cap = _vmem_capacity_bytes()
    vmem_limit = int(vmem_cap * 3 // 4)          # ~48 MiB v7x, ~96 MiB v5e/v6e

    # ---- add_self_loops(fill_value='mean') --------------------------------
    seg_sum = jax.ops.segment_sum(edge_attr, dst, num_segments=N)
    cnt = jax.ops.segment_sum(jnp.ones((E,), jnp.float32), dst, num_segments=N)
    loop_attr = seg_sum / jnp.maximum(cnt, 1.0)[:, None]
    loop_idx = jnp.arange(N, dtype=src.dtype)
    src_sl = jnp.concatenate([src, loop_idx])
    dst_sl = jnp.concatenate([dst, loop_idx])
    edge_attr_sl = jnp.concatenate([edge_attr, loop_attr], axis=0)

    # ---- projections & per-node / per-edge attention terms (O(N*H*C)) -----
    h = jnp.dot(node, params["w"])                              # [N, H*C]
    h3 = h.reshape(N, heads, C)
    a_dst = jnp.einsum("nhc,hc->nh", h3, params["att_dst"])     # [N, H]
    a_src = jnp.einsum("nhc,hc->nh", h3, params["att_src"])     # [N, H]
    v_edge = jnp.einsum("fhc,hc->fh",
                        params["w_edge"].reshape(Fe, heads, C),
                        params["att_edge"])                     # [Fe, H]
    alpha_edge = edge_attr_sl @ v_edge                          # [E', H]
    # bf16-quantize once so the in-kernel logits and the wrapper's per-edge
    # alpha reconstruction see identical edge-bias values.
    alpha_edge_q = alpha_edge.astype(jnp.bfloat16).astype(jnp.float32)

    # ---- dense, mask-folded edge bias (bf16) -------------------------------
    # TODO(synk): replace with a CSR edge stream (PrefetchScalarGridSpec) to
    # avoid the O(H*N^2) HBM write + read of this tensor.
    NS = _round_up(N, 128)                        # source (lane) dimension
    PW = _round_up(C + 2 * heads, 128)            # packed output width
    tile = _pick_dst_tile(N, NS, heads, C, PW, vmem_cap)
    ND = _round_up(N, tile)                       # padded dst dimension
    e_dense = jnp.full((heads, ND, NS), _NEG, jnp.bfloat16)
    e_dense = e_dense.at[:, dst_sl, src_sl].set(
        alpha_edge_q.T.astype(jnp.bfloat16))

    a_dst_p = jnp.zeros((ND, heads), jnp.float32).at[:N].set(a_dst)
    a_src_p = jnp.zeros((heads, NS), jnp.float32).at[:, :N].set(a_src.T)
    h_p = jnp.zeros((NS, heads * C), jnp.bfloat16).at[:N].set(
        h.astype(jnp.bfloat16))
    bias2 = params["bias"][None, :]                             # [1, C]

    kernel_inputs = [e_dense, a_dst_p, a_src_p, h_p, bias2]
    in_specs = [
        pl.BlockSpec((heads, tile, NS), lambda i: (0, i, 0)),   # e (streamed)
        pl.BlockSpec((tile, heads), lambda i: (i, 0)),          # a_dst
        pl.BlockSpec((heads, NS), lambda i: (0, 0)),            # a_src (resident)
        pl.BlockSpec((NS, heads * C), lambda i: (0, 0)),        # h (resident)
        pl.BlockSpec((1, C), lambda i: (0, 0)),                 # bias
    ]
    if skip_connection:
        x_p = jnp.zeros((ND, C), jnp.float32).at[:N].set(node)
        in_specs.append(pl.BlockSpec((tile, C), lambda i: (i, 0)))
        kernel_inputs.append(x_p)

    def _run_kernel1(cdt):
        kern = functools.partial(_gat_tile_kernel, heads=heads, out_ch=C,
                                 skip_connection=skip_connection,
                                 compute_dtype=cdt)
        return pl.pallas_call(
            kern,
            grid=(ND // tile,),
            in_specs=in_specs,
            out_specs=pl.BlockSpec((tile, PW), lambda i: (i, 0)),
            out_shape=jax.ShapeDtypeStruct((ND, PW), jnp.float32),
            compiler_params=pltpu.CompilerParams(
                dimension_semantics=("parallel",),
                vmem_limit_bytes=vmem_limit),
        )(*kernel_inputs)

    cdt = _softmax_compute_dtype()
    try:
        packed = _run_kernel1(cdt)
    except Exception:
        if cdt == jnp.float32:
            raise
        packed = _run_kernel1(jnp.float32)        # safe f32 fallback

    out_pre = packed[:N, :C]
    m_n = packed[:N, C:C + heads]
    s_n = packed[:N, C + heads:C + 2 * heads]

    # ---- per-edge attention weights from the per-row softmax stats --------
    logit_e = (a_dst[dst_sl] + a_src[src_sl]) + alpha_edge_q    # [E', H]
    logit_e = jnp.where(logit_e > 0, logit_e, _LEAKY * logit_e)
    alpha_edges = jnp.exp(logit_e - m_n[dst_sl]) / s_n[dst_sl]  # [E', H]

    # ---- GraphNorm stats via segment sums (no one-hot matmuls) ------------
    counts = jnp.maximum(
        jax.ops.segment_sum(jnp.ones((N,), jnp.float32), batch, num_segments=B),
        1.0)
    mean_g = jax.ops.segment_sum(out_pre, batch, num_segments=B) / counts[:, None]
    centered = out_pre - mean_g[batch] * params["gn_mean_scale"][None, :]
    var_g = jax.ops.segment_sum(centered * centered, batch,
                                num_segments=B) / counts[:, None]
    var_n = var_g[batch]

    # ---- GraphNorm apply + ReLU (lane-dense folded elementwise kernel) ----
    fold = 128 // C if (C <= 128 and 128 % C == 0) else 1
    lane_w = fold * C
    rows = -(-N // fold)                           # folded rows needed
    tile2 = min(2048, _round_up(rows, 8))
    rows_p = _round_up(rows, tile2)
    NP2 = rows_p * fold
    c_p = jnp.zeros((NP2, C), jnp.float32).at[:N].set(centered) \
             .reshape(rows_p, lane_w)
    v_p = jnp.ones((NP2, C), jnp.float32).at[:N].set(var_n) \
             .reshape(rows_p, lane_w)
    w_t = jnp.tile(params["gn_weight"], fold)[None, :]
    b_t = jnp.tile(params["gn_bias"], fold)[None, :]
    y_p = pl.pallas_call(
        _graphnorm_relu_kernel,
        grid=(rows_p // tile2,),
        in_specs=[pl.BlockSpec((tile2, lane_w), lambda i: (i, 0)),
                  pl.BlockSpec((tile2, lane_w), lambda i: (i, 0)),
                  pl.BlockSpec((1, lane_w), lambda i: (0, 0)),
                  pl.BlockSpec((1, lane_w), lambda i: (0, 0))],
        out_specs=pl.BlockSpec((tile2, lane_w), lambda i: (i, 0)),
        out_shape=jax.ShapeDtypeStruct((rows_p, lane_w), jnp.float32),
        compiler_params=pltpu.CompilerParams(
            dimension_semantics=("parallel",),
            vmem_limit_bytes=vmem_limit),
    )(c_p, v_p, w_t, b_t)
    y = y_p.reshape(NP2, C)[:N]

    # return_attention_weights=True: (edge_index incl. self loops, alpha[E', H])
    edge_index_sl = jnp.stack([src_sl, dst_sl])
    return y, (edge_index_sl, alpha_edges)


if __name__ == "__main__":
    key = jax.random.PRNGKey(0)
    hidden_dim, edge_dim, heads = 32, 8, 4
    N, B = 8, 2

    kn, ke, kp = jax.random.split(key, 3)
    node = jax.random.normal(kn, (N, hidden_dim), jnp.float32)
    # two graphs of 4 nodes each, bidirectional ring per graph (no self loops)
    src = jnp.array([0, 1, 2, 3, 1, 2, 3, 0, 4, 5, 6, 7, 5, 6, 7, 4],
                    dtype=jnp.int32)
    dst = jnp.array([1, 2, 3, 0, 0, 1, 2, 3, 5, 6, 7, 4, 4, 5, 6, 7],
                    dtype=jnp.int32)
    edge_index = jnp.stack([src, dst])
    edge_attr = jax.random.normal(ke, (src.shape[0], edge_dim), jnp.float32)
    batch = jnp.array([0, 0, 0, 0, 1, 1, 1, 1], dtype=jnp.int32)

    params = init_params(kp, hidden_dim, edge_dim, heads)

    y, (ei_sl, att) = gatconv_layer_forward(node, edge_index, edge_attr, batch,
                                            params, num_graphs=B,
                                            skip_connection=False)
    jax.block_until_ready((y, ei_sl, att))
    assert y.shape == (N, hidden_dim)
    assert att.shape == (src.shape[0] + N, heads)
    assert bool(jnp.all(jnp.isfinite(y))) and bool(jnp.all(jnp.isfinite(att)))
    # attention weights must (approximately) sum to 1 over incoming edges
    sums = jax.ops.segment_sum(att, ei_sl[1], num_segments=N)
    assert bool(jnp.allclose(sums, 1.0, atol=1e-2))
    print("KERNEL_OK")
</pallas_src>

<mosaic_0001>
module attributes {stable_mosaic.version = 11 : i64} {
  func.func @_gat_tile_kernel(%arg0: i32, %arg1: memref<4x16x128xbf16, #tpu.memory_space<vmem>>, %arg2: memref<16x4xf32, #tpu.memory_space<vmem>>, %arg3: memref<4x128xf32, #tpu.memory_space<vmem>>, %arg4: memref<128x128xbf16, #tpu.memory_space<vmem>>, %arg5: memref<1x32xf32, #tpu.memory_space<vmem>>, %arg6: memref<16x128xf32, #tpu.memory_space<vmem>>) attributes {dimension_semantics = [#tpu.dimension_semantics<parallel>], iteration_bounds = array<i64: 1>, scalar_prefetch = 0 : i64, scratch_operands = 0 : i64, tpu.core_type = #tpu.core_type<tc>, window_params = [{transform_indices = @transform_0, window_bounds = array<i64: 4, 16, 128>}, {transform_indices = @transform_1, window_bounds = array<i64: 16, 4>}, {pipeline_mode = #tpu.pipeline_mode<synchronous>, transform_indices = @transform_2, window_bounds = array<i64: 4, 128>}, {pipeline_mode = #tpu.pipeline_mode<synchronous>, transform_indices = @transform_3, window_bounds = array<i64: 128, 128>}, {pipeline_mode = #tpu.pipeline_mode<synchronous>, transform_indices = @transform_4, window_bounds = array<i64: 1, 32>}, {transform_indices = @transform_5, window_bounds = array<i64: 16, 128>}]} {
    %cst = arith.constant 0.000000e+00 : f32
    %0 = vector.broadcast %cst : f32 to vector<16x32xf32>
    %c0 = arith.constant 0 : index
    %c0_0 = arith.constant 0 : index
    %1 = vector.load %arg2[%c0, %c0_0] : memref<16x4xf32, #tpu.memory_space<vmem>>, vector<16x1xf32>
    %c0_1 = arith.constant 0 : index
    %c0_2 = arith.constant 0 : index
    %2 = vector.load %arg3[%c0_1, %c0_2] : memref<4x128xf32, #tpu.memory_space<vmem>>, vector<1x128xf32>
    %3 = vector.broadcast %1 : vector<16x1xf32> to vector<16x128xf32>
    %4 = vector.broadcast %2 : vector<1x128xf32> to vector<16x128xf32>
    %5 = arith.addf %3, %4 : vector<16x128xf32>
    %c0_3 = arith.constant 0 : index
    %c0_4 = arith.constant 0 : index
    %c0_5 = arith.constant 0 : index
    %6 = vector.load %arg1[%c0_3, %c0_4, %c0_5] : memref<4x16x128xbf16, #tpu.memory_space<vmem>>, vector<1x16x128xbf16>
    %7 = vector.shape_cast %6 : vector<1x16x128xbf16> to vector<16x128xbf16>
    %8 = arith.extf %7 : vector<16x128xbf16> to vector<16x128xf32>
    %9 = arith.addf %5, %8 : vector<16x128xf32>
    %cst_6 = arith.constant 0.000000e+00 : f32
    %10 = vector.broadcast %cst_6 : f32 to vector<16x128xf32>
    %11 = arith.cmpf ogt, %9, %10 : vector<16x128xf32>
    %cst_7 = arith.constant 2.000000e-01 : f32
    %12 = vector.broadcast %cst_7 : f32 to vector<16x128xf32>
    %13 = arith.mulf %12, %9 : vector<16x128xf32>
    %14 = arith.select %11, %9, %13 : vector<16x128xi1>, vector<16x128xf32>
    %cst_8 = arith.constant dense<0xFF800000> : vector<16xf32>
    %15 = vector.multi_reduction <maximumf>, %14, %cst_8 [1] : vector<16x128xf32> to vector<16xf32>
    %16 = vector.shape_cast %15 : vector<16xf32> to vector<16x1xf32>
    %17 = vector.broadcast %16 : vector<16x1xf32> to vector<16x128xf32>
    %18 = arith.subf %14, %17 : vector<16x128xf32>
    %19 = math.exp %18 : vector<16x128xf32>
    %cst_9 = arith.constant dense<0.000000e+00> : vector<16xf32>
    %20 = vector.multi_reduction <add>, %19, %cst_9 [1] : vector<16x128xf32> to vector<16xf32>
    %21 = vector.shape_cast %20 : vector<16xf32> to vector<16x1xf32>
    %22 = arith.truncf %19 : vector<16x128xf32> to vector<16x128xbf16>
    %c0_10 = arith.constant 0 : index
    %c0_11 = arith.constant 0 : index
    %23 = vector.load %arg4[%c0_10, %c0_11] : memref<128x128xbf16, #tpu.memory_space<vmem>>, vector<128x32xbf16>
    %cst_12 = arith.constant dense<0.000000e+00> : vector<16x32xf32>
    %24 = tpu.matmul %22, %23, %cst_12 {dimension_numbers = #tpu.dot_dimension_numbers<[1], [0], [0], [1], [0, 0, 1, 1], [], []>} : vector<16x128xbf16>, vector<128x32xbf16>, vector<16x32xf32> -> vector<16x32xf32>
    %25 = tpu.reciprocal %21 {approx = true} : vector<16x1xf32> -> vector<16x1xf32>
    %26 = vector.broadcast %25 : vector<16x1xf32> to vector<16x32xf32>
    %27 = arith.mulf %24, %26 : vector<16x32xf32>
    %28 = arith.addf %0, %27 : vector<16x32xf32>
    %c0_13 = arith.constant 0 : index
    %c1 = arith.constant 1 : index
    %29 = vector.load %arg2[%c0_13, %c1] : memref<16x4xf32, #tpu.memory_space<vmem>>, vector<16x1xf32>
    %c1_14 = arith.constant 1 : index
    %c0_15 = arith.constant 0 : index
    %30 = vector.load %arg3[%c1_14, %c0_15] : memref<4x128xf32, #tpu.memory_space<vmem>>, vector<1x128xf32>
    %31 = vector.broadcast %29 : vector<16x1xf32> to vector<16x128xf32>
    %32 = vector.broadcast %30 : vector<1x128xf32> to vector<16x128xf32>
    %33 = arith.addf %31, %32 : vector<16x128xf32>
    %c1_16 = arith.constant 1 : index
    %c0_17 = arith.constant 0 : index
    %c0_18 = arith.constant 0 : index
    %34 = vector.load %arg1[%c1_16, %c0_17, %c0_18] : memref<4x16x128xbf16, #tpu.memory_space<vmem>>, vector<1x16x128xbf16>
    %35 = vector.shape_cast %34 : vector<1x16x128xbf16> to vector<16x128xbf16>
    %36 = arith.extf %35 : vector<16x128xbf16> to vector<16x128xf32>
    %37 = arith.addf %33, %36 : vector<16x128xf32>
    %cst_19 = arith.constant 0.000000e+00 : f32
    %38 = vector.broadcast %cst_19 : f32 to vector<16x128xf32>
    %39 = arith.cmpf ogt, %37, %38 : vector<16x128xf32>
    %cst_20 = arith.constant 2.000000e-01 : f32
    %40 = vector.broadcast %cst_20 : f32 to vector<16x128xf32>
    %41 = arith.mulf %40, %37 : vector<16x128xf32>
    %42 = arith.select %39, %37, %41 : vector<16x128xi1>, vector<16x128xf32>
    %cst_21 = arith.constant dense<0xFF800000> : vector<16xf32>
    %43 = vector.multi_reduction <maximumf>, %42, %cst_21 [1] : vector<16x128xf32> to vector<16xf32>
    %44 = vector.shape_cast %43 : vector<16xf32> to vector<16x1xf32>
    %45 = vector.broadcast %44 : vector<16x1xf32> to vector<16x128xf32>
    %46 = arith.subf %42, %45 : vector<16x128xf32>
    %47 = math.exp %46 : vector<16x128xf32>
    %cst_22 = arith.constant dense<0.000000e+00> : vector<16xf32>
    %48 = vector.multi_reduction <add>, %47, %cst_22 [1] : vector<16x128xf32> to vector<16xf32>
    %49 = vector.shape_cast %48 : vector<16xf32> to vector<16x1xf32>
    %50 = arith.truncf %47 : vector<16x128xf32> to vector<16x128xbf16>
    %c0_23 = arith.constant 0 : index
    %c32 = arith.constant 32 : index
    %51 = vector.load %arg4[%c0_23, %c32] : memref<128x128xbf16, #tpu.memory_space<vmem>>, vector<128x32xbf16>
    %cst_24 = arith.constant dense<0.000000e+00> : vector<16x32xf32>
    %52 = tpu.matmul %50, %51, %cst_24 {dimension_numbers = #tpu.dot_dimension_numbers<[1], [0], [0], [1], [0, 0, 1, 1], [], []>} : vector<16x128xbf16>, vector<128x32xbf16>, vector<16x32xf32> -> vector<16x32xf32>
    %53 = tpu.reciprocal %49 {approx = true} : vector<16x1xf32> -> vector<16x1xf32>
    %54 = vector.broadcast %53 : vector<16x1xf32> to vector<16x32xf32>
    %55 = arith.mulf %52, %54 : vector<16x32xf32>
    %56 = arith.addf %28, %55 : vector<16x32xf32>
    %c0_25 = arith.constant 0 : index
    %c2 = arith.constant 2 : index
    %57 = vector.load %arg2[%c0_25, %c2] : memref<16x4xf32, #tpu.memory_space<vmem>>, vector<16x1xf32>
    %c2_26 = arith.constant 2 : index
    %c0_27 = arith.constant 0 : index
    %58 = vector.load %arg3[%c2_26, %c0_27] : memref<4x128xf32, #tpu.memory_space<vmem>>, vector<1x128xf32>
    %59 = vector.broadcast %57 : vector<16x1xf32> to vector<16x128xf32>
    %60 = vector.broadcast %58 : vector<1x128xf32> to vector<16x128xf32>
    %61 = arith.addf %59, %60 : vector<16x128xf32>
    %c2_28 = arith.constant 2 : index
    %c0_29 = arith.constant 0 : index
    %c0_30 = arith.constant 0 : index
    %62 = vector.load %arg1[%c2_28, %c0_29, %c0_30] : memref<4x16x128xbf16, #tpu.memory_space<vmem>>, vector<1x16x128xbf16>
    %63 = vector.shape_cast %62 : vector<1x16x128xbf16> to vector<16x128xbf16>
    %64 = arith.extf %63 : vector<16x128xbf16> to vector<16x128xf32>
    %65 = arith.addf %61, %64 : vector<16x128xf32>
    %cst_31 = arith.constant 0.000000e+00 : f32
    %66 = vector.broadcast %cst_31 : f32 to vector<16x128xf32>
    %67 = arith.cmpf ogt, %65, %66 : vector<16x128xf32>
    %cst_32 = arith.constant 2.000000e-01 : f32
    %68 = vector.broadcast %cst_32 : f32 to vector<16x128xf32>
    %69 = arith.mulf %68, %65 : vector<16x128xf32>
    %70 = arith.select %67, %65, %69 : vector<16x128xi1>, vector<16x128xf32>
    %cst_33 = arith.constant dense<0xFF800000> : vector<16xf32>
    %71 = vector.multi_reduction <maximumf>, %70, %cst_33 [1] : vector<16x128xf32> to vector<16xf32>
    %72 = vector.shape_cast %71 : vector<16xf32> to vector<16x1xf32>
    %73 = vector.broadcast %72 : vector<16x1xf32> to vector<16x128xf32>
    %74 = arith.subf %70, %73 : vector<16x128xf32>
    %75 = math.exp %74 : vector<16x128xf32>
    %cst_34 = arith.constant dense<0.000000e+00> : vector<16xf32>
    %76 = vector.multi_reduction <add>, %75, %cst_34 [1] : vector<16x128xf32> to vector<16xf32>
    %77 = vector.shape_cast %76 : vector<16xf32> to vector<16x1xf32>
    %78 = arith.truncf %75 : vector<16x128xf32> to vector<16x128xbf16>
    %c0_35 = arith.constant 0 : index
    %c64 = arith.constant 64 : index
    %79 = vector.load %arg4[%c0_35, %c64] : memref<128x128xbf16, #tpu.memory_space<vmem>>, vector<128x32xbf16>
    %cst_36 = arith.constant dense<0.000000e+00> : vector<16x32xf32>
    %80 = tpu.matmul %78, %79, %cst_36 {dimension_numbers = #tpu.dot_dimension_numbers<[1], [0], [0], [1], [0, 0, 1, 1], [], []>} : vector<16x128xbf16>, vector<128x32xbf16>, vector<16x32xf32> -> vector<16x32xf32>
    %81 = tpu.reciprocal %77 {approx = true} : vector<16x1xf32> -> vector<16x1xf32>
    %82 = vector.broadcast %81 : vector<16x1xf32> to vector<16x32xf32>
    %83 = arith.mulf %80, %82 : vector<16x32xf32>
    %84 = arith.addf %56, %83 : vector<16x32xf32>
    %c0_37 = arith.constant 0 : index
    %c3 = arith.constant 3 : index
    %85 = vector.load %arg2[%c0_37, %c3] : memref<16x4xf32, #tpu.memory_space<vmem>>, vector<16x1xf32>
    %c3_38 = arith.constant 3 : index
    %c0_39 = arith.constant 0 : index
    %86 = vector.load %arg3[%c3_38, %c0_39] : memref<4x128xf32, #tpu.memory_space<vmem>>, vector<1x128xf32>
    %87 = vector.broadcast %85 : vector<16x1xf32> to vector<16x128xf32>
    %88 = vector.broadcast %86 : vector<1x128xf32> to vector<16x128xf32>
    %89 = arith.addf %87, %88 : vector<16x128xf32>
    %c3_40 = arith.constant 3 : index
    %c0_41 = arith.constant 0 : index
    %c0_42 = arith.constant 0 : index
    %90 = vector.load %arg1[%c3_40, %c0_41, %c0_42] : memref<4x16x128xbf16, #tpu.memory_space<vmem>>, vector<1x16x128xbf16>
    %91 = vector.shape_cast %90 : vector<1x16x128xbf16> to vector<16x128xbf16>
    %92 = arith.extf %91 : vector<16x128xbf16> to vector<16x128xf32>
    %93 = arith.addf %89, %92 : vector<16x128xf32>
    %cst_43 = arith.constant 0.000000e+00 : f32
    %94 = vector.broadcast %cst_43 : f32 to vector<16x128xf32>
    %95 = arith.cmpf ogt, %93, %94 : vector<16x128xf32>
    %cst_44 = arith.constant 2.000000e-01 : f32
    %96 = vector.broadcast %cst_44 : f32 to vector<16x128xf32>
    %97 = arith.mulf %96, %93 : vector<16x128xf32>
    %98 = arith.select %95, %93, %97 : vector<16x128xi1>, vector<16x128xf32>
    %cst_45 = arith.constant dense<0xFF800000> : vector<16xf32>
    %99 = vector.multi_reduction <maximumf>, %98, %cst_45 [1] : vector<16x128xf32> to vector<16xf32>
    %100 = vector.shape_cast %99 : vector<16xf32> to vector<16x1xf32>
    %101 = vector.broadcast %100 : vector<16x1xf32> to vector<16x128xf32>
    %102 = arith.subf %98, %101 : vector<16x128xf32>
    %103 = math.exp %102 : vector<16x128xf32>
    %cst_46 = arith.constant dense<0.000000e+00> : vector<16xf32>
    %104 = vector.multi_reduction <add>, %103, %cst_46 [1] : vector<16x128xf32> to vector<16xf32>
    %105 = vector.shape_cast %104 : vector<16xf32> to vector<16x1xf32>
    %106 = arith.truncf %103 : vector<16x128xf32> to vector<16x128xbf16>
    %c0_47 = arith.constant 0 : index
    %c96 = arith.constant 96 : index
    %107 = vector.load %arg4[%c0_47, %c96] : memref<128x128xbf16, #tpu.memory_space<vmem>>, vector<128x32xbf16>
    %cst_48 = arith.constant dense<0.000000e+00> : vector<16x32xf32>
    %108 = tpu.matmul %106, %107, %cst_48 {dimension_numbers = #tpu.dot_dimension_numbers<[1], [0], [0], [1], [0, 0, 1, 1], [], []>} : vector<16x128xbf16>, vector<128x32xbf16>, vector<16x32xf32> -> vector<16x32xf32>
    %109 = tpu.reciprocal %105 {approx = true} : vector<16x1xf32> -> vector<16x1xf32>
    %110 = vector.broadcast %109 : vector<16x1xf32> to vector<16x32xf32>
    %111 = arith.mulf %108, %110 : vector<16x32xf32>
    %112 = arith.addf %84, %111 : vector<16x32xf32>
    %cst_49 = arith.constant 2.500000e-01 : f32
    %113 = vector.broadcast %cst_49 : f32 to vector<16x32xf32>
    %114 = arith.mulf %112, %113 : vector<16x32xf32>
    %c0_50 = arith.constant 0 : index
    %c0_51 = arith.constant 0 : index
    %115 = vector.load %arg5[%c0_50, %c0_51] : memref<1x32xf32, #tpu.memory_space<vmem>>, vector<1x32xf32>
    %116 = vector.broadcast %115 : vector<1x32xf32> to vector<16x32xf32>
    %117 = arith.addf %114, %116 : vector<16x32xf32>
    %cst_52 = arith.constant 0.000000e+00 : f32
    %118 = vector.broadcast %cst_52 : f32 to vector<16x88xf32>
    %119 = tpu.concatenate %117, %16, %44, %72, %100, %21, %49, %77, %105, %118 in 1 : vector<16x32xf32>, vector<16x1xf32>, vector<16x1xf32>, vector<16x1xf32>, vector<16x1xf32>, vector<16x1xf32>, vector<16x1xf32>, vector<16x1xf32>, vector<16x1xf32>, vector<16x88xf32> -> vector<16x128xf32>
    %c0_53 = arith.constant 0 : index
    %c0_54 = arith.constant 0 : index
    %120 = vector.load %arg6[%c0_53, %c0_54] : memref<16x128xf32, #tpu.memory_space<vmem>>, vector<16x128xf32>
    tpu.vector_store %arg6[%c0_53, %c0_54], %119 {strides = array<i32>} : memref<16x128xf32, #tpu.memory_space<vmem>>, vector<16x128xf32>,
    return
  }
  func.func @transform_0(%arg0: i32) -> (i32, i32, i32) {
    %c0_i32 = arith.constant 0 : i32
    %c0_i32_0 = arith.constant 0 : i32
    %c0_i32_1 = arith.constant 0 : i32
    return %c0_i32, %arg0, %c0_i32_0 : i32, i32, i32
  }
  func.func @transform_1(%arg0: i32) -> (i32, i32) {
    %c0_i32 = arith.constant 0 : i32
    %c0_i32_0 = arith.constant 0 : i32
    return %arg0, %c0_i32 : i32, i32
  }
  func.func @transform_2(%arg0: i32) -> (i32, i32) {
    %c0_i32 = arith.constant 0 : i32
    %c0_i32_0 = arith.constant 0 : i32
    %c0_i32_1 = arith.constant 0 : i32
    return %c0_i32, %c0_i32_0 : i32, i32
  }
  func.func @transform_3(%arg0: i32) -> (i32, i32) {
    %c0_i32 = arith.constant 0 : i32
    %c0_i32_0 = arith.constant 0 : i32
    %c0_i32_1 = arith.constant 0 : i32
    return %c0_i32, %c0_i32_0 : i32, i32
  }
  func.func @transform_4(%arg0: i32) -> (i32, i32) {
    %c0_i32 = arith.constant 0 : i32
    %c0_i32_0 = arith.constant 0 : i32
    %c0_i32_1 = arith.constant 0 : i32
    return %c0_i32, %c0_i32_0 : i32, i32
  }
  func.func @transform_5(%arg0: i32) -> (i32, i32) {
    %c0_i32 = arith.constant 0 : i32
    %c0_i32_0 = arith.constant 0 : i32
    return %arg0, %c0_i32 : i32, i32
  }
}

</mosaic_0001>

<llo_original>
// kernel: tpu_custom_call.1
$region0: #{tpu_custom_call.1}
  #allocation0 [shape = 'u32[]', space=smem, size = 0x4, offset = 0x4, fixed_abs, tag = 'smem constant byte address 0x4 - core index']
  #allocation1 [shape = 'u32[144,128]{1,0:T(1,128)}', space=vmem, size = 0x12000, scoped, tag = 'internal scratch']
  %s0 = inlined_call_operand.hbm [shape: bf16[4,16,128], index: 0, kind: input, shape index: {}]
  %s1 = inlined_call_operand.vmem [shape: f32[16,4], index: 1, kind: input, shape index: {}]
  %s2 = inlined_call_operand.vmem [shape: f32[4,128], index: 2, kind: input, shape index: {}]
  %s3 = inlined_call_operand.hbm [shape: bf16[128,128], index: 3, kind: input, shape index: {}]
  %s4 = inlined_call_operand.vmem [shape: f32[1,32], index: 4, kind: input, shape index: {}]
  %s5 = inlined_call_operand.hbm [shape: f32[16,128], index: 5, kind: output, shape index: {}]
  %s6 = sld [smem:[#allocation0]]
  $region38: #{tpu_custom_call.1} parent=0
    _
  %s8 = ssub.s32 1, %s6
  %s9 = scalar_select 0, %s8, %s6
  $region1: #{tpu_custom_call.1} parent=0
    #allocation2 [shape = 'u8[16384]{0}', space=vmem, size = 0x4000, scoped, tag = 'input window, operand 0, single buffered']
    #allocation3 [shape = 's32[1]{0}', space=sflag, size = 0x4, scoped, tag = 'scoped memory for tpu_custom_call.1']
    #allocation4 [shape = 's32[1]{0}', space=sflag, size = 0x4, scoped, tag = 'scoped memory for tpu_custom_call.1']
    #allocation5 [shape = 'u8[32768]{0}', space=vmem, size = 0x8000, scoped, tag = 'input window, operand 3, single buffered']
    #allocation6 [shape = 's32[1]{0}', space=sflag, size = 0x4, scoped, tag = 'scoped memory for tpu_custom_call.1']
    #allocation7 [shape = 'u8[8192]{0}', space=vmem, size = 0x2000, scoped, tag = 'output window, operand 0, single buffered']
    %10 = vsyncpa [#allocation3], 0
    %11 = vsyncpa [#allocation6], 0
    %12 = vsyncpa [#allocation4], 0
    // Predicated region
    $region2: #{tpu_custom_call.1} parent=1 // pred_check
      _
    $region3: #{tpu_custom_call.1} parent=1 // pred_check_branch
      %14 = sbr.rel (0) target = $region5
    $region4: #{tpu_custom_call.1} parent=1 // pred_region
      %s16 = ssub.s32 512, 512
      %17 = vsyncadd [#allocation3], %s16
      %s18 = sshll.u32 [#allocation2], 4
      %s19 = int_to_ptr.vmem [resolvable:$true] %s18
      %24 = dma.hbm_to_vmem [thread:$0]  %s0, 512, %s19, [#allocation3], 64, 64, 4
    $region5: #{tpu_custom_call.1} parent=1 // pred_fallthru
      _
    // Predicated region
    $region6: #{tpu_custom_call.1} parent=1 // pred_check
      _
    $region7: #{tpu_custom_call.1} parent=1 // pred_check_branch
      %26 = sbr.rel (0) target = $region9
    $region8: #{tpu_custom_call.1} parent=1 // pred_region
      _
    $region9: #{tpu_custom_call.1} parent=1 // pred_fallthru
      _
    // Predicated region
    $region10: #{tpu_custom_call.1} parent=1 // pred_check
      _
    $region11: #{tpu_custom_call.1} parent=1 // pred_check_branch
      %28 = sbr.rel (0) target = $region13
    $region12: #{tpu_custom_call.1} parent=1 // pred_region
      _
    $region13: #{tpu_custom_call.1} parent=1 // pred_fallthru
      _
    // Predicated region
    $region14: #{tpu_custom_call.1} parent=1 // pred_check
      _
    $region15: #{tpu_custom_call.1} parent=1 // pred_check_branch
      %30 = sbr.rel (0) target = $region17
    $region16: #{tpu_custom_call.1} parent=1 // pred_region
      %s32 = ssub.s32 1024, 1024
      %33 = vsyncadd [#allocation6], %s32
      %s34 = sshll.u32 [#allocation5], 4
      %s35 = int_to_ptr.vmem [resolvable:$true] %s34
      %40 = dma.hbm_to_vmem [thread:$0]  %s3, 1024, %s35, [#allocation6], 64, 64, 4
    $region17: #{tpu_custom_call.1} parent=1 // pred_fallthru
      _
    // Predicated region
    $region18: #{tpu_custom_call.1} parent=1 // pred_check
      _
    $region19: #{tpu_custom_call.1} parent=1 // pred_check_branch
      %42 = sbr.rel (0) target = $region21
    $region20: #{tpu_custom_call.1} parent=1 // pred_region
      _
    $region21: #{tpu_custom_call.1} parent=1 // pred_fallthru
      _
    // Predicated region
    $region22: #{tpu_custom_call.1} parent=1 // pred_check
      _
    $region23: #{tpu_custom_call.1} parent=1 // pred_check_branch
      %44 = sbr.rel (0) target = $region25
    $region24: #{tpu_custom_call.1} parent=1 // pred_region
      %45 = dma.done [#allocation3], 512
    $region25: #{tpu_custom_call.1} parent=1 // pred_fallthru
      _
    // Predicated region
    $region26: #{tpu_custom_call.1} parent=1 // pred_check
      _
    $region27: #{tpu_custom_call.1} parent=1 // pred_check_branch
      %47 = sbr.rel (0) target = $region29
    $region28: #{tpu_custom_call.1} parent=1 // pred_region
      %48 = dma.done [#allocation6], 1024
    $region29: #{tpu_custom_call.1} parent=1 // pred_fallthru
      _
    %v50 = vld [vmem:[%s1] sm:$0xff]
    %v51 = vld [vmem:[%s1 + $0x8] sm:$0xff]
    %v52 = vld [vmem:[%s2] sm:$0x1]
    %54 = vset.pattern.permute.xlu0 0
    %55 = vperm.xlu0 %54, %v50
    %v56 = vpop.permute.xlu0 %55
    %59 = vset.pattern.permute.xlu0 0
    %60 = vperm.xlu0 %59, %v51
    %v61 = vpop.permute.xlu0 %60
    %v63 = vlaneseq
    %v64 = vshrl.u32 %v63, 7
    %v65 = vsub.s32 0, %v64
    %v66 = vrot.slane %v52, %v65
    %v67 = vadd.f32 %v56, %v66
    %v68 = vadd.f32 %v61, %v66
    %v69 = vld [vmem:[#allocation2] sm:$0xf]
    %v70 = vld [vmem:[#allocation2 + $0x4] sm:$0xf]
    %v71 = vunpack.c.l.bf16 %v69
    %v72 = vunpack.c.l.bf16 %v70
    %v73 = vadd.f32 %v67, %v71
    %v74 = vadd.f32 %v68, %v72
    %vm75 = vcmp.gt.f32.partialorder %v73, 0.0
    %vm76 = vcmp.gt.f32.partialorder %v74, 0.0
    %v77 = vmul.f32 %v73, 0.2
    %v78 = vmul.f32 %v74, 0.2
    %v79 = vsel %vm75, %v73, %v77
    %v80 = vsel %vm76, %v74, %v78
    %81 = vmax.xlane.f32.xlu0 %v79
    %v82 = vpop.xlane.xlu0 %81
    %83 = vmax.xlane.f32.xlu0 %v80
    %v84 = vpop.xlane.xlu0 %83
    %v85 = vsub.f32 %v79, %v82
    %v86 = vsub.f32 %v80, %v84
    %v87 = vmul.f32 %v85, 1.442695
    %v88 = vpow.pop %v87
    %v89 = vmul.f32 %v86, 1.442695
    %v90 = vpow.pop %v89
    %91 = vadd.xlane.f32.xlu0 %v88
    %v92 = vpop.xlane.xlu0 %91
    %93 = vadd.xlane.f32.xlu0 %v90
    %v94 = vpop.xlane.xlu0 %93
    %v95 = vpack.c.bf16 %v90, %v88
    %v96 = vld [vmem:[#allocation5] sm:$0xf]
    %v97 = vld [vmem:[#allocation5 + $0x4] sm:$0xf]
    %v98 = vld [vmem:[#allocation5 + $0x8] sm:$0xf]
    %v99 = vld [vmem:[#allocation5 + $0xc] sm:$0xf]
    %v100 = vld [vmem:[#allocation5 + $0x10] sm:$0xf]
    %v101 = vld [vmem:[#allocation5 + $0x14] sm:$0xf]
    %v102 = vld [vmem:[#allocation5 + $0x18] sm:$0xf]
    %v103 = vld [vmem:[#allocation5 + $0x1c] sm:$0xf]
    %v104 = vld [vmem:[#allocation5 + $0x20] sm:$0xf]
    %v105 = vld [vmem:[#allocation5 + $0x24] sm:$0xf]
    %v106 = vld [vmem:[#allocation5 + $0x28] sm:$0xf]
    %v107 = vld [vmem:[#allocation5 + $0x2c] sm:$0xf]
    %v108 = vld [vmem:[#allocation5 + $0x30] sm:$0xf]
    %v109 = vld [vmem:[#allocation5 + $0x34] sm:$0xf]
    %v110 = vld [vmem:[#allocation5 + $0x38] sm:$0xf]
    %v111 = vld [vmem:[#allocation5 + $0x3c] sm:$0xf]
    %v128 = vunpack.c.l.b16 %v96
    %v129 = vunpack.c.l.b16 %v97
    %v130 = vunpack.c.l.b16 %v98
    %v131 = vunpack.c.l.b16 %v99
    %v132 = vunpack.c.l.b16 %v100
    %v133 = vunpack.c.l.b16 %v101
    %v134 = vunpack.c.l.b16 %v102
    %v135 = vunpack.c.l.b16 %v103
    %v136 = vunpack.c.l.b16 %v104
    %v137 = vunpack.c.l.b16 %v105
    %v138 = vunpack.c.l.b16 %v106
    %v139 = vunpack.c.l.b16 %v107
    %v140 = vunpack.c.l.b16 %v108
    %v141 = vunpack.c.l.b16 %v109
    %v142 = vunpack.c.l.b16 %v110
    %v143 = vunpack.c.l.b16 %v111
    %v144 = vpack.c.b16 %v129, %v128
    %v145 = vpack.c.b16 %v131, %v130
    %v146 = vpack.c.b16 %v133, %v132
    %v147 = vpack.c.b16 %v135, %v134
    %v148 = vpack.c.b16 %v137, %v136
    %v149 = vpack.c.b16 %v139, %v138
    %v150 = vpack.c.b16 %v141, %v140
    %v151 = vpack.c.b16 %v143, %v142
    %160 = vmatprep.subr.bf16.mxu0 0
    %161 = vmatpush1.bf16.msra.mxu0 %v144
    %162 = vmatprep.subr.bf16.mxu0 0
    %163 = vmatpush1.bf16.msra.mxu0 %v145
    %164 = vmatprep.subr.bf16.mxu0 0
    %165 = vmatpush1.bf16.msra.mxu0 %v146
    %166 = vmatprep.subr.bf16.mxu0 0
    %167 = vmatpush1.bf16.msra.mxu0 %v147
    %168 = vmatprep.subr.bf16.mxu0 0
    %169 = vmatpush1.bf16.msra.mxu0 %v148
    %170 = vmatprep.subr.bf16.mxu0 0
    %171 = vmatpush1.bf16.msra.mxu0 %v149
    %172 = vmatprep.subr.bf16.mxu0 0
    %173 = vmatpush1.bf16.msra.mxu0 %v150
    %174 = vmatprep.subr.bf16.mxu0 0
    %175 = vmatpush1.bf16.msra.mxu0 %v151
    %176 = vmatprep.subr.bf16.mxu0 0
    %177 = vmatpush1.bf16.msra.mxu0 0
    %178 = vmatprep.subr.bf16.mxu0 0
    %179 = vmatpush1.bf16.msra.mxu0 0
    %180 = vmatprep.subr.bf16.mxu0 0
    %181 = vmatpush1.bf16.msra.mxu0 0
    %182 = vmatprep.subr.bf16.mxu0 0
    %183 = vmatpush1.bf16.msra.mxu0 0
    %184 = vmatprep.subr.bf16.mxu0 0
    %185 = vmatpush1.bf16.msra.mxu0 0
    %186 = vmatprep.subr.bf16.mxu0 0
    %187 = vmatpush1.bf16.msra.mxu0 0
    %188 = vmatprep.subr.bf16.mxu0 0
    %189 = vmatpush1.bf16.msra.mxu0 0
    %190 = vmatprep.subr.bf16.mxu0 0
    %191 = vmatpush1.bf16.msra.mxu0 0
    %192 = vmatprep.mubr.bf16.mxu0 0
    %193 = vmatmul.mubr.bf16.gmra.mrb[0].mxu0 %v95
    %v194 = vpop.f32.mrb[0].mxu0
    %v195 = vadd.f32 0.0, %v194
    %v196 = vpop.f32.mrb[0].mxu0
    %v197 = vpop.f32.mrb[0].mxu0
    %v198 = vadd.f32 0.0, %v197
    %v199 = vpop.f32.mrb[0].mxu0
    %200 = vdwg.mxu0
    %v201 = vrcp.pop %v92
    %v202 = vrcp.pop %v94
    %v203 = vmul.f32 %v195, %v201
    %v204 = vmul.f32 %v198, %v202
    %v205 = vadd.f32 %v203, 0.0
    %v206 = vadd.f32 %v204, 0.0
    %v207 = vld [vmem:[%s2 + $0x1] sm:$0x1]
    %208 = vset.pattern.permute.xlu0 1
    %209 = vperm.xlu0 %208, %v50
    %v210 = vpop.permute.xlu0 %209
    %212 = vset.pattern.permute.xlu0 1
    %213 = vperm.xlu0 %212, %v51
    %v214 = vpop.permute.xlu0 %213
    %v216 = vlaneseq
    %v217 = vshrl.u32 %v216, 7
    %v218 = vsub.s32 0, %v217
    %v219 = vrot.slane %v207, %v218
    %v220 = vadd.f32 %v210, %v219
    %v221 = vadd.f32 %v214, %v219
    %s222 = scalar_lea.vmem [#allocation2], 8
    %v223 = vld [vmem:[%s222] sm:$0xf]
    %v224 = vld [vmem:[%s222 + $0x4] sm:$0xf]
    %v225 = vunpack.c.l.bf16 %v223
    %v226 = vunpack.c.l.bf16 %v224
    %v227 = vadd.f32 %v220, %v225
    %v228 = vadd.f32 %v221, %v226
    %vm229 = vcmp.gt.f32.partialorder %v227, 0.0
    %vm230 = vcmp.gt.f32.partialorder %v228, 0.0
    %v231 = vmul.f32 %v227, 0.2
    %v232 = vmul.f32 %v228, 0.2
    %v233 = vsel %vm229, %v227, %v231
    %v234 = vsel %vm230, %v228, %v232
    %235 = vmax.xlane.f32.xlu0 %v233
    %v236 = vpop.xlane.xlu0 %235
    %237 = vmax.xlane.f32.xlu0 %v234
    %v238 = vpop.xlane.xlu0 %237
    %v239 = vsub.f32 %v233, %v236
    %v240 = vsub.f32 %v234, %v238
    %v241 = vmul.f32 %v239, 1.442695
    %v242 = vpow.pop %v241
    %v243 = vmul.f32 %v240, 1.442695
    %v244 = vpow.pop %v243
    %245 = vadd.xlane.f32.xlu0 %v242
    %v246 = vpop.xlane.xlu0 %245
    %247 = vadd.xlane.f32.xlu0 %v244
    %v248 = vpop.xlane.xlu0 %247
    %v249 = vpack.c.bf16 %v244, %v242
    %250 = vrot.lane.b32.xlu0 %v144, 96
    %v251 = vpop.permute.xlu0 %250
    %252 = vrot.lane.b32.xlu0 %v145, 96
    %v253 = vpop.permute.xlu0 %252
    %254 = vrot.lane.b32.xlu0 %v146, 96
    %v255 = vpop.permute.xlu0 %254
    %256 = vrot.lane.b32.xlu0 %v147, 96
    %v257 = vpop.permute.xlu0 %256
    %258 = vrot.lane.b32.xlu0 %v148, 96
    %v259 = vpop.permute.xlu0 %258
    %260 = vrot.lane.b32.xlu0 %v149, 96
    %v261 = vpop.permute.xlu0 %260
    %262 = vrot.lane.b32.xlu0 %v150, 96
    %v263 = vpop.permute.xlu0 %262
    %264 = vrot.lane.b32.xlu0 %v151, 96
    %v265 = vpop.permute.xlu0 %264
    %274 = vmatprep.subr.bf16.mxu0 0
    %275 = vmatpush1.bf16.msra.mxu0 %v251
    %276 = vmatprep.subr.bf16.mxu0 0
    %277 = vmatpush1.bf16.msra.mxu0 %v253
    %278 = vmatprep.subr.bf16.mxu0 0
    %279 = vmatpush1.bf16.msra.mxu0 %v255
    %280 = vmatprep.subr.bf16.mxu0 0
    %281 = vmatpush1.bf16.msra.mxu0 %v257
    %282 = vmatprep.subr.bf16.mxu0 0
    %283 = vmatpush1.bf16.msra.mxu0 %v259
    %284 = vmatprep.subr.bf16.mxu0 0
    %285 = vmatpush1.bf16.msra.mxu0 %v261
    %286 = vmatprep.subr.bf16.mxu0 0
    %287 = vmatpush1.bf16.msra.mxu0 %v263
    %288 = vmatprep.subr.bf16.mxu0 0
    %289 = vmatpush1.bf16.msra.mxu0 %v265
    %290 = vmatprep.subr.bf16.mxu0 0
    %291 = vmatpush1.bf16.msra.mxu0 0
    %292 = vmatprep.subr.bf16.mxu0 0
    %293 = vmatpush1.bf16.msra.mxu0 0
    %294 = vmatprep.subr.bf16.mxu0 0
    %295 = vmatpush1.bf16.msra.mxu0 0
    %296 = vmatprep.subr.bf16.mxu0 0
    %297 = vmatpush1.bf16.msra.mxu0 0
    %298 = vmatprep.subr.bf16.mxu0 0
    %299 = vmatpush1.bf16.msra.mxu0 0
    %300 = vmatprep.subr.bf16.mxu0 0
    %301 = vmatpush1.bf16.msra.mxu0 0
    %302 = vmatprep.subr.bf16.mxu0 0
    %303 = vmatpush1.bf16.msra.mxu0 0
    %304 = vmatprep.subr.bf16.mxu0 0
    %305 = vmatpush1.bf16.msra.mxu0 0
    %306 = vmatprep.mubr.bf16.mxu0 0
    %307 = vmatmul.mubr.bf16.gmra.mrb[0].mxu0 %v249
    %v308 = vpop.f32.mrb[0].mxu0
    %v309 = vadd.f32 0.0, %v308
    %v310 = vpop.f32.mrb[0].mxu0
    %v311 = vpop.f32.mrb[0].mxu0
    %v312 = vadd.f32 0.0, %v311
    %v313 = vpop.f32.mrb[0].mxu0
    %314 = vdwg.mxu0
    %v315 = vrcp.pop %v246
    %v316 = vrcp.pop %v248
    %v317 = vmul.f32 %v309, %v315
    %v318 = vmul.f32 %v312, %v316
    %v319 = vadd.f32 %v205, %v317
    %v320 = vadd.f32 %v206, %v318
    %v321 = vld [vmem:[%s2 + $0x2] sm:$0x1]
    %322 = vset.pattern.permute.xlu0 2
    %323 = vperm.xlu0 %322, %v50
    %v324 = vpop.permute.xlu0 %323
    %326 = vset.pattern.permute.xlu0 2
    %327 = vperm.xlu0 %326, %v51
    %v328 = vpop.permute.xlu0 %327
    %v330 = vlaneseq
    %v331 = vshrl.u32 %v330, 7
    %v332 = vsub.s32 0, %v331
    %v333 = vrot.slane %v321, %v332
    %v334 = vadd.f32 %v324, %v333
    %v335 = vadd.f32 %v328, %v333
    %s336 = scalar_lea.vmem [#allocation2], 16
    %v337 = vld [vmem:[%s336] sm:$0xf]
    %v338 = vld [vmem:[%s336 + $0x4] sm:$0xf]
    %v339 = vunpack.c.l.bf16 %v337
    %v340 = vunpack.c.l.bf16 %v338
    %v341 = vadd.f32 %v334, %v339
    %v342 = vadd.f32 %v335, %v340
    %vm343 = vcmp.gt.f32.partialorder %v341, 0.0
    %vm344 = vcmp.gt.f32.partialorder %v342, 0.0
    %v345 = vmul.f32 %v341, 0.2
    %v346 = vmul.f32 %v342, 0.2
    %v347 = vsel %vm343, %v341, %v345
    %v348 = vsel %vm344, %v342, %v346
    %349 = vmax.xlane.f32.xlu0 %v347
    %v350 = vpop.xlane.xlu0 %349
    %351 = vmax.xlane.f32.xlu0 %v348
    %v352 = vpop.xlane.xlu0 %351
    %v353 = vsub.f32 %v347, %v350
    %v354 = vsub.f32 %v348, %v352
    %v355 = vmul.f32 %v353, 1.442695
    %v356 = vpow.pop %v355
    %v357 = vmul.f32 %v354, 1.442695
    %v358 = vpow.pop %v357
    %359 = vadd.xlane.f32.xlu0 %v356
    %v360 = vpop.xlane.xlu0 %359
    %361 = vadd.xlane.f32.xlu0 %v358
    %v362 = vpop.xlane.xlu0 %361
    %v363 = vpack.c.bf16 %v358, %v356
    %364 = vrot.lane.b32.xlu0 %v144, 64
    %v365 = vpop.permute.xlu0 %364
    %366 = vrot.lane.b32.xlu0 %v145, 64
    %v367 = vpop.permute.xlu0 %366
    %368 = vrot.lane.b32.xlu0 %v146, 64
    %v369 = vpop.permute.xlu0 %368
    %370 = vrot.lane.b32.xlu0 %v147, 64
    %v371 = vpop.permute.xlu0 %370
    %372 = vrot.lane.b32.xlu0 %v148, 64
    %v373 = vpop.permute.xlu0 %372
    %374 = vrot.lane.b32.xlu0 %v149, 64
    %v375 = vpop.permute.xlu0 %374
    %376 = vrot.lane.b32.xlu0 %v150, 64
    %v377 = vpop.permute.xlu0 %376
    %378 = vrot.lane.b32.xlu0 %v151, 64
    %v379 = vpop.permute.xlu0 %378
    %388 = vmatprep.subr.bf16.mxu0 0
    %389 = vmatpush1.bf16.msra.mxu0 %v365
    %390 = vmatprep.subr.bf16.mxu0 0
    %391 = vmatpush1.bf16.msra.mxu0 %v367
    %392 = vmatprep.subr.bf16.mxu0 0
    %393 = vmatpush1.bf16.msra.mxu0 %v369
    %394 = vmatprep.subr.bf16.mxu0 0
    %395 = vmatpush1.bf16.msra.mxu0 %v371
    %396 = vmatprep.subr.bf16.mxu0 0
    %397 = vmatpush1.bf16.msra.mxu0 %v373
    %398 = vmatprep.subr.bf16.mxu0 0
    %399 = vmatpush1.bf16.msra.mxu0 %v375
    %400 = vmatprep.subr.bf16.mxu0 0
    %401 = vmatpush1.bf16.msra.mxu0 %v377
    %402 = vmatprep.subr.bf16.mxu0 0
    %403 = vmatpush1.bf16.msra.mxu0 %v379
    %404 = vmatprep.subr.bf16.mxu0 0
    %405 = vmatpush1.bf16.msra.mxu0 0
    %406 = vmatprep.subr.bf16.mxu0 0
    %407 = vmatpush1.bf16.msra.mxu0 0
    %408 = vmatprep.subr.bf16.mxu0 0
    %409 = vmatpush1.bf16.msra.mxu0 0
    %410 = vmatprep.subr.bf16.mxu0 0
    %411 = vmatpush1.bf16.msra.mxu0 0
    %412 = vmatprep.subr.bf16.mxu0 0
    %413 = vmatpush1.bf16.msra.mxu0 0
    %414 = vmatprep.subr.bf16.mxu0 0
    %415 = vmatpush1.bf16.msra.mxu0 0
    %416 = vmatprep.subr.bf16.mxu0 0
    %417 = vmatpush1.bf16.msra.mxu0 0
    %418 = vmatprep.subr.bf16.mxu0 0
    %419 = vmatpush1.bf16.msra.mxu0 0
    %420 = vmatprep.mubr.bf16.mxu0 0
    %421 = vmatmul.mubr.bf16.gmra.mrb[0].mxu0 %v363
    %v422 = vpop.f32.mrb[0].mxu0
    %v423 = vadd.f32 0.0, %v422
    %v424 = vpop.f32.mrb[0].mxu0
    %v425 = vpop.f32.mrb[0].mxu0
    %v426 = vadd.f32 0.0, %v425
    %v427 = vpop.f32.mrb[0].mxu0
    %428 = vdwg.mxu0
    %v429 = vrcp.pop %v360
    %v430 = vrcp.pop %v362
    %v431 = vmul.f32 %v423, %v429
    %v432 = vmul.f32 %v426, %v430
    %v433 = vadd.f32 %v319, %v431
    %v434 = vadd.f32 %v320, %v432
    %v435 = vld [vmem:[%s2 + $0x3] sm:$0x1]
    %436 = vset.pattern.permute.xlu0 3
    %437 = vperm.xlu0 %436, %v50
    %v438 = vpop.permute.xlu0 %437
    %440 = vset.pattern.permute.xlu0 3
    %441 = vperm.xlu0 %440, %v51
    %v442 = vpop.permute.xlu0 %441
    %v444 = vlaneseq
    %v445 = vshrl.u32 %v444, 7
    %v446 = vsub.s32 0, %v445
    %v447 = vrot.slane %v435, %v446
    %v448 = vadd.f32 %v438, %v447
    %v449 = vadd.f32 %v442, %v447
    %s450 = scalar_lea.vmem [#allocation2], 24
    %v451 = vld [vmem:[%s450] sm:$0xf]
    %v452 = vld [vmem:[%s450 + $0x4] sm:$0xf]
    %v453 = vunpack.c.l.bf16 %v451
    %v454 = vunpack.c.l.bf16 %v452
    %v455 = vadd.f32 %v448, %v453
    %v456 = vadd.f32 %v449, %v454
    %vm457 = vcmp.gt.f32.partialorder %v455, 0.0
    %vm458 = vcmp.gt.f32.partialorder %v456, 0.0
    %v459 = vmul.f32 %v455, 0.2
    %v460 = vmul.f32 %v456, 0.2
    %v461 = vsel %vm457, %v455, %v459
    %v462 = vsel %vm458, %v456, %v460
    %463 = vmax.xlane.f32.xlu0 %v461
    %v464 = vpop.xlane.xlu0 %463
    %465 = vmax.xlane.f32.xlu0 %v462
    %v466 = vpop.xlane.xlu0 %465
    %v467 = vsub.f32 %v461, %v464
    %v468 = vsub.f32 %v462, %v466
    %v469 = vmul.f32 %v467, 1.442695
    %v470 = vpow.pop %v469
    %v471 = vmul.f32 %v468, 1.442695
    %v472 = vpow.pop %v471
    %473 = vadd.xlane.f32.xlu0 %v470
    %v474 = vpop.xlane.xlu0 %473
    %475 = vadd.xlane.f32.xlu0 %v472
    %v476 = vpop.xlane.xlu0 %475
    %v477 = vpack.c.bf16 %v472, %v470
    %478 = vrot.lane.b32.xlu0 %v144, 32
    %v479 = vpop.permute.xlu0 %478
    %480 = vrot.lane.b32.xlu0 %v145, 32
    %v481 = vpop.permute.xlu0 %480
    %482 = vrot.lane.b32.xlu0 %v146, 32
    %v483 = vpop.permute.xlu0 %482
    %484 = vrot.lane.b32.xlu0 %v147, 32
    %v485 = vpop.permute.xlu0 %484
    %486 = vrot.lane.b32.xlu0 %v148, 32
    %v487 = vpop.permute.xlu0 %486
    %488 = vrot.lane.b32.xlu0 %v149, 32
    %v489 = vpop.permute.xlu0 %488
    %490 = vrot.lane.b32.xlu0 %v150, 32
    %v491 = vpop.permute.xlu0 %490
    %492 = vrot.lane.b32.xlu0 %v151, 32
    %v493 = vpop.permute.xlu0 %492
    %502 = vmatprep.subr.bf16.mxu0 0
    %503 = vmatpush1.bf16.msra.mxu0 %v479
    %504 = vmatprep.subr.bf16.mxu0 0
    %505 = vmatpush1.bf16.msra.mxu0 %v481
    %506 = vmatprep.subr.bf16.mxu0 0
    %507 = vmatpush1.bf16.msra.mxu0 %v483
    %508 = vmatprep.subr.bf16.mxu0 0
    %509 = vmatpush1.bf16.msra.mxu0 %v485
    %510 = vmatprep.subr.bf16.mxu0 0
    %511 = vmatpush1.bf16.msra.mxu0 %v487
    %512 = vmatprep.subr.bf16.mxu0 0
    %513 = vmatpush1.bf16.msra.mxu0 %v489
    %514 = vmatprep.subr.bf16.mxu0 0
    %515 = vmatpush1.bf16.msra.mxu0 %v491
    %516 = vmatprep.subr.bf16.mxu0 0
    %517 = vmatpush1.bf16.msra.mxu0 %v493
    %518 = vmatprep.subr.bf16.mxu0 0
    %519 = vmatpush1.bf16.msra.mxu0 0
    %520 = vmatprep.subr.bf16.mxu0 0
    %521 = vmatpush1.bf16.msra.mxu0 0
    %522 = vmatprep.subr.bf16.mxu0 0
    %523 = vmatpush1.bf16.msra.mxu0 0
    %524 = vmatprep.subr.bf16.mxu0 0
    %525 = vmatpush1.bf16.msra.mxu0 0
    %526 = vmatprep.subr.bf16.mxu0 0
    %527 = vmatpush1.bf16.msra.mxu0 0
    %528 = vmatprep.subr.bf16.mxu0 0
    %529 = vmatpush1.bf16.msra.mxu0 0
    %530 = vmatprep.subr.bf16.mxu0 0
    %531 = vmatpush1.bf16.msra.mxu0 0
    %532 = vmatprep.subr.bf16.mxu0 0
    %533 = vmatpush1.bf16.msra.mxu0 0
    %534 = vmatprep.mubr.bf16.mxu0 0
    %535 = vmatmul.mubr.bf16.gmra.mrb[0].mxu0 %v477
    %v536 = vpop.f32.mrb[0].mxu0
    %v537 = vadd.f32 0.0, %v536
    %v538 = vpop.f32.mrb[0].mxu0
    %v539 = vpop.f32.mrb[0].mxu0
    %v540 = vadd.f32 0.0, %v539
    %v541 = vpop.f32.mrb[0].mxu0
    %542 = vdwg.mxu0
    %v543 = vrcp.pop %v474
    %v544 = vrcp.pop %v476
    %v545 = vmul.f32 %v537, %v543
    %v546 = vmul.f32 %v540, %v544
    %v547 = vadd.f32 %v433, %v545
    %v548 = vadd.f32 %v434, %v546
    %v549 = vmul.f32 %v547, 0.25
    %v550 = vmul.f32 %v548, 0.25
    %v551 = vld [vmem:[%s4] sm:$0x1]
    %v553 = vlaneseq
    %v554 = vshrl.u32 %v553, 7
    %v555 = vsub.s32 0, %v554
    %v556 = vrot.slane %v551, %v555
    %v558 = vadd.f32 %v549, %v556
    %v559 = vadd.f32 %v550, %v556
    %vm560 = vcmask 261120
    %v561 = vsel %vm560, %v558, %v82
    %v562 = vsel %vm560, %v559, %v84
    %vm563 = vcmask 269312
    %v564 = vsel %vm563, %v561, %v236
    %v565 = vsel %vm563, %v562, %v238
    %vm566 = vcmask 277504
    %v567 = vsel %vm566, %v564, %v350
    %v568 = vsel %vm566, %v565, %v352
    %vm569 = vcmask 285696
    %v570 = vsel %vm569, %v567, %v464
    %v571 = vsel %vm569, %v568, %v466
    %vm572 = vcmask 293888
    %v573 = vsel %vm572, %v570, %v92
    %v574 = vsel %vm572, %v571, %v94
    %vm575 = vcmask 302080
    %v576 = vsel %vm575, %v573, %v246
    %v577 = vsel %vm575, %v574, %v248
    %vm578 = vcmask 310272
    %v579 = vsel %vm578, %v576, %v360
    %v580 = vsel %vm578, %v577, %v362
    %vm581 = vcmask 318464
    %v582 = vsel %vm581, %v579, %v474
    %v583 = vsel %vm581, %v580, %v476
    %vm584 = vcmask 326656
    %v585 = vsel %vm584, %v582, 0.0
    %v586 = vsel %vm584, %v583, 0.0
    %587 = vst [vmem:[#allocation7] sm:$0xff] %v585
    %588 = vst [vmem:[#allocation7 + $0x8] sm:$0xff] %v586
    // Predicated region
    $region30: #{tpu_custom_call.1} parent=1 // pred_check
      _
    $region31: #{tpu_custom_call.1} parent=1 // pred_check_branch
      %590 = sbr.rel (0) target = $region33
    $region32: #{tpu_custom_call.1} parent=1 // pred_region
      %s592 = ssub.s32 256, 256
      %593 = vsyncadd [#allocation4], %s592
      %s594 = sshll.u32 [#allocation7], 4
      %s595 = int_to_ptr.vmem [resolvable:$true] %s594
      %600 = dma.vmem_to_hbm [thread:$0]  %s595, 256, %s5, [#allocation4], 128, 128, 8
    $region33: #{tpu_custom_call.1} parent=1 // pred_fallthru
      _
    // Predicated region
    $region34: #{tpu_custom_call.1} parent=1 // pred_check
      _
    $region35: #{tpu_custom_call.1} parent=1 // pred_check_branch
      %602 = sbr.rel (0) target = $region37
    $region36: #{tpu_custom_call.1} parent=1 // pred_region
      %603 = dma.done [#allocation4], 256
    $region37: #{tpu_custom_call.1} parent=1 // pred_fallthru
      _
    %604 = vsyncpa [#allocation3], 1
    %605 = vsyncpa [#allocation6], 1
    %606 = vsyncpa [#allocation4], 1

</llo_original>
